<compile_context>
chip_gen: v7x
topology: tpu7x:2x2x1
jax: 0.10.0
libtpu: 0.0.40
codegen_flags: <defaults>
</compile_context>

<pallas_src>
import functools

import jax
import jax.numpy as jnp
from jax import lax
from jax.experimental import pallas as pl
from jax.experimental.pallas import tpu as pltpu

_LANES = 128
_SUB = 8
_EPS = 1e-07
_TARGET_BLOCK_BYTES = 1 << 20   # ~1 MiB of (x + t) per grid step
_MAX_SLABS = 2                  # outer "parallel" axis (both TCs on v7x)


def _pu_sums_kernel(x_ref, t_ref, out_ref, *, block_rows, inner_steps,
                    total_rows):
    c = pl.program_id(0)
    i = pl.program_id(1)

    @pl.when(i == 0)
    def _init():
        out_ref[...] = jnp.zeros_like(out_ref)

    # Unclamped linear block id; the input index_map clamps it to a valid
    # block and the row mask below zeroes duplicated / out-of-range rows.
    linear = c * inner_steps + i
    row0 = linear * block_rows

    x = x_ref[...].astype(jnp.float32)
    t = t_ref[...].astype(jnp.float32)

    rows = lax.broadcasted_iota(jnp.int32, x.shape, 0) + row0
    valid = rows < total_rows

    # Sanitize both x (NaN-safe before log) and t (both masks) in the
    # invalid region.
    xs = jnp.clip(jnp.where(valid, x, 0.5), _EPS, 1.0 - _EPS)
    ts = jnp.where(valid, t, 0.0)

    pos = (ts == 1.0).astype(jnp.float32)    # positive label == +1
    unl = (ts == -1.0).astype(jnp.float32)   # unlabeled label == -1

    y_pos = -jnp.log(xs)
    y_unl = -jnp.log(1.0 - xs)

    def fold(v):  # (block_rows, 128) -> (8, 128); major-axis (VPU-only) adds
        return v.reshape(block_rows // _SUB, _SUB, _LANES).sum(axis=0)

    out_ref[0 * _SUB:1 * _SUB, :] += fold(pos)
    out_ref[1 * _SUB:2 * _SUB, :] += fold(unl)
    out_ref[2 * _SUB:3 * _SUB, :] += fold(pos * y_pos)
    out_ref[3 * _SUB:4 * _SUB, :] += fold(pos * y_unl)
    out_ref[4 * _SUB:5 * _SUB, :] += fold(unl * y_unl)


def imnn_pusb_loss(x, t, prior, prior_, gamma=1.0, beta=0.0):
    if not 0.0 < prior < 1.0:
        raise NotImplementedError("The class prior should be in (0, 1)")

    xf = x.reshape(-1)
    tf = t.reshape(-1)
    n = xf.shape[0]

    # Only lane-align (multiple of 8*128 elements).  Inputs keep their native
    # dtype; the kernel casts per-block, so no full-array f32 HBM pass.
    tile = _SUB * _LANES
    pad = (-n) % tile
    if pad:
        xf = jnp.pad(xf, (0, pad))     # x pad value irrelevant (t pad = 0)
        tf = jnp.pad(tf, (0, pad))     # 0 -> neither positive nor unlabeled
    total_rows = (n + pad) // _LANES
    x2 = xf.reshape(total_rows, _LANES)
    t2 = tf.reshape(total_rows, _LANES)

    # Block rows sized so one step moves ~1 MiB of (x + t); multiple of 8.
    per_row_bytes = _LANES * (x2.dtype.itemsize + t2.dtype.itemsize)
    block_rows = max(_SUB, (_TARGET_BLOCK_BYTES // per_row_bytes) // _SUB * _SUB)
    block_rows = min(block_rows, total_rows)

    n_blocks = pl.cdiv(total_rows, block_rows)
    num_slabs = max(1, min(_MAX_SLABS, n_blocks))   # no redundant pass when tiny
    inner_steps = pl.cdiv(n_blocks, num_slabs)

    def in_map(c, i):
        # Clamp to a real block; out-of-range steps are masked in-kernel.
        return (jnp.minimum(c * inner_steps + i, n_blocks - 1), 0)

    kernel = functools.partial(
        _pu_sums_kernel, block_rows=block_rows, inner_steps=inner_steps,
        total_rows=total_rows)

    bytes_in = x2.size * x2.dtype.itemsize + t2.size * t2.dtype.itemsize
    cost = pl.CostEstimate(
        flops=12 * n,
        transcendentals=2 * n,
        bytes_accessed=bytes_in + num_slabs * 5 * _SUB * _LANES * 4,
    )

    out = pl.pallas_call(
        kernel,
        out_shape=jax.ShapeDtypeStruct((num_slabs, 5 * _SUB, _LANES),
                                       jnp.float32),
        grid_spec=pltpu.PrefetchScalarGridSpec(
            num_scalar_prefetch=0,
            grid=(num_slabs, inner_steps),
            in_specs=[
                pl.BlockSpec((block_rows, _LANES), in_map),
                pl.BlockSpec((block_rows, _LANES), in_map),
            ],
            out_specs=pl.BlockSpec((None, 5 * _SUB, _LANES),
                                   lambda c, i: (c, 0, 0)),
        ),
        compiler_params=pltpu.CompilerParams(
            dimension_semantics=("parallel", "arbitrary"),
        ),
        cost_estimate=cost,
    )(x2, t2)

    # O(1) epilogue: reduce the slabs and the (8,128) tiles, then the scalar
    # PU risk math.
    acc = out.sum(axis=0)                                   # (40, 128)
    s = acc.reshape(5, _SUB * _LANES).sum(axis=1)           # 5 scalars
    n_pos = jnp.maximum(1.0, s[0])
    n_unl = jnp.maximum(1.0, s[1])

    positive_risk = prior * s[2] / n_pos
    negative_risk = (s[4] / n_unl - prior * s[3] / n_pos) \
        * (1.0 - prior_) / (1.0 - prior)
    objective = positive_risk + negative_risk

    # PyTorch branches on negative_risk.item(); the returned value x_out is
    # identical when expressed as a select.
    x_out = jnp.where(negative_risk < -beta, -gamma * negative_risk, objective)
    return x_out


def _ref_loss(x, t, prior, prior_, gamma, beta):
    """Pure-JAX reference mirroring the PyTorch forward."""
    x = jnp.clip(x.astype(jnp.float32), _EPS, 1.0 - _EPS)
    pos = (t == 1).astype(jnp.float32)
    unl = (t == -1).astype(jnp.float32)
    n_pos = jnp.maximum(1.0, pos.sum())
    n_unl = jnp.maximum(1.0, unl.sum())
    y_pos = -jnp.log(x)
    y_unl = -jnp.log(1.0 - x)
    positive_risk = (prior * pos / n_pos * y_pos).sum()
    negative_risk = ((unl / n_unl - prior * pos / n_pos)
                     * (1.0 - prior_) / (1.0 - prior) * y_unl).sum()
    objective = positive_risk + negative_risk
    return jnp.where(negative_risk < -beta, -gamma * negative_risk, objective)


if __name__ == "__main__":
    key = jax.random.PRNGKey(0)
    prior, prior_, gamma, beta = 0.3, 0.4, 1.0, 0.0

    # Case 1: small, lane-aligned: scores in (0,1), labels in {+1,-1}.
    k1, k2, k3, k4 = jax.random.split(key, 4)
    x1 = jax.nn.sigmoid(jax.random.normal(k1, (2, 128), jnp.float32))
    t1 = jnp.where(jax.random.uniform(k2, (2, 128)) < 0.3, 1.0, -1.0).astype(
        jnp.float32)

    # Case 2: small, ragged (exercises padding / in-kernel masking).
    x2 = jax.nn.sigmoid(jax.random.normal(k3, (3, 173), jnp.float32))
    t2 = jnp.where(jax.random.uniform(k4, (3, 173)) < 0.3, 1.0, -1.0).astype(
        jnp.float32)

    ok = True
    for xv, tv in ((x1, t1), (x2, t2)):
        out = imnn_pusb_loss(xv, tv, prior, prior_, gamma, beta)
        out = jax.block_until_ready(out)
        ref = _ref_loss(xv, tv, prior, prior_, gamma, beta)
        ok &= abs(float(out) - float(ref)) < 1e-4
        assert ok, (float(out), float(ref))

    print("KERNEL_OK")
</pallas_src>

<mosaic_0001>
module attributes {stable_mosaic.version = 11 : i64} {
  func.func @_pu_sums_kernel(%arg0: i32, %arg1: i32, %arg2: memref<8x128xf32, #tpu.memory_space<vmem>>, %arg3: memref<8x128xf32, #tpu.memory_space<vmem>>, %arg4: memref<1x40x128xf32, #tpu.memory_space<vmem>>) attributes {dimension_semantics = [#tpu.dimension_semantics<parallel>, #tpu.dimension_semantics<arbitrary>], iteration_bounds = array<i64: 1, 1>, scalar_prefetch = 0 : i64, scratch_operands = 0 : i64, tpu.core_type = #tpu.core_type<tc>, window_params = [{transform_indices = @transform_0, window_bounds = array<i64: 8, 128>}, {transform_indices = @transform_1, window_bounds = array<i64: 8, 128>}, {transform_indices = @transform_2, window_bounds = array<i64: 1, 40, 128>}]} {
    %c0_i32 = arith.constant 0 : i32
    %0 = arith.cmpi eq, %arg1, %c0_i32 : i32
    %1 = arith.extui %0 : i1 to i32
    %c0_i32_0 = arith.constant 0 : i32
    %2 = arith.cmpi ne, %1, %c0_i32_0 : i32
    scf.if %2 {
      %cst_44 = arith.constant 0.000000e+00 : f32
      %80 = vector.broadcast %cst_44 : f32 to vector<40x128xf32>
      %c0_45 = arith.constant 0 : index
      %c0_46 = arith.constant 0 : index
      %c0_47 = arith.constant 0 : index
      %81 = vector.load %arg4[%c0_45, %c0_46, %c0_47] : memref<1x40x128xf32, #tpu.memory_space<vmem>>, vector<1x40x128xf32>
      %82 = vector.shape_cast %81 : vector<1x40x128xf32> to vector<40x128xf32>
      %83 = vector.shape_cast %80 : vector<40x128xf32> to vector<1x40x128xf32>
      tpu.vector_store %arg4[%c0_45, %c0_46, %c0_47], %83 {strides = array<i32>} : memref<1x40x128xf32, #tpu.memory_space<vmem>>, vector<1x40x128xf32>,
    } else {
    }
    %c1_i32 = arith.constant 1 : i32
    %3 = arith.muli %arg0, %c1_i32 : i32
    %4 = arith.addi %3, %arg1 : i32
    %c8_i32 = arith.constant 8 : i32
    %5 = arith.muli %4, %c8_i32 : i32
    %c0 = arith.constant 0 : index
    %c0_1 = arith.constant 0 : index
    %6 = vector.load %arg2[%c0, %c0_1] : memref<8x128xf32, #tpu.memory_space<vmem>>, vector<8x128xf32>
    %c0_2 = arith.constant 0 : index
    %c0_3 = arith.constant 0 : index
    %7 = vector.load %arg3[%c0_2, %c0_3] : memref<8x128xf32, #tpu.memory_space<vmem>>, vector<8x128xf32>
    %8 = tpu.iota {dimensions = array<i32: 0>} : vector<8x128xi32>
    %9 = vector.broadcast %5 : i32 to vector<8x128xi32>
    %10 = arith.addi %8, %9 : vector<8x128xi32>
    %c8_i32_4 = arith.constant 8 : i32
    %11 = vector.broadcast %c8_i32_4 : i32 to vector<8x128xi32>
    %12 = arith.cmpi slt, %10, %11 : vector<8x128xi32>
    %cst = arith.constant 5.000000e-01 : f32
    %13 = vector.broadcast %cst : f32 to vector<8x128xf32>
    %14 = arith.select %12, %6, %13 : vector<8x128xi1>, vector<8x128xf32>
    %cst_5 = arith.constant 1.000000e-07 : f32
    %cst_6 = arith.constant 0.99999988 : f32
    %15 = vector.broadcast %cst_5 : f32 to vector<8x128xf32>
    %16 = arith.maximumf %15, %14 : vector<8x128xf32>
    %17 = vector.broadcast %cst_6 : f32 to vector<8x128xf32>
    %18 = arith.minimumf %17, %16 : vector<8x128xf32>
    %cst_7 = arith.constant 0.000000e+00 : f32
    %19 = vector.broadcast %cst_7 : f32 to vector<8x128xf32>
    %20 = arith.select %12, %7, %19 : vector<8x128xi1>, vector<8x128xf32>
    %cst_8 = arith.constant 1.000000e+00 : f32
    %21 = vector.broadcast %cst_8 : f32 to vector<8x128xf32>
    %22 = arith.cmpf oeq, %20, %21 : vector<8x128xf32>
    %23 = arith.extui %22 : vector<8x128xi1> to vector<8x128xi32>
    %24 = arith.sitofp %23 : vector<8x128xi32> to vector<8x128xf32>
    %cst_9 = arith.constant -1.000000e+00 : f32
    %25 = vector.broadcast %cst_9 : f32 to vector<8x128xf32>
    %26 = arith.cmpf oeq, %20, %25 : vector<8x128xf32>
    %27 = arith.extui %26 : vector<8x128xi1> to vector<8x128xi32>
    %28 = arith.sitofp %27 : vector<8x128xi32> to vector<8x128xf32>
    %29 = math.log %18 : vector<8x128xf32>
    %cst_10 = arith.constant 0.000000e+00 : f32
    %30 = vector.broadcast %cst_10 : f32 to vector<8x128xf32>
    %31 = arith.subf %30, %29 : vector<8x128xf32>
    %cst_11 = arith.constant 1.000000e+00 : f32
    %32 = vector.broadcast %cst_11 : f32 to vector<8x128xf32>
    %33 = arith.subf %32, %18 : vector<8x128xf32>
    %34 = math.log %33 : vector<8x128xf32>
    %cst_12 = arith.constant 0.000000e+00 : f32
    %35 = vector.broadcast %cst_12 : f32 to vector<8x128xf32>
    %36 = arith.subf %35, %34 : vector<8x128xf32>
    %c0_13 = arith.constant 0 : index
    %c0_14 = arith.constant 0 : index
    %c0_15 = arith.constant 0 : index
    %37 = vector.load %arg4[%c0_13, %c0_14, %c0_15] : memref<1x40x128xf32, #tpu.memory_space<vmem>>, vector<1x8x128xf32>
    %38 = vector.shape_cast %37 : vector<1x8x128xf32> to vector<8x128xf32>
    %39 = vector.shape_cast %24 : vector<8x128xf32> to vector<1x8x128xf32>
    %cst_16 = arith.constant dense<0.000000e+00> : vector<8x128xf32>
    %40 = vector.multi_reduction <add>, %39, %cst_16 [0] : vector<1x8x128xf32> to vector<8x128xf32>
    %41 = arith.addf %38, %40 : vector<8x128xf32>
    %c0_17 = arith.constant 0 : index
    %c0_18 = arith.constant 0 : index
    %c0_19 = arith.constant 0 : index
    %42 = vector.load %arg4[%c0_17, %c0_18, %c0_19] : memref<1x40x128xf32, #tpu.memory_space<vmem>>, vector<1x8x128xf32>
    %43 = vector.shape_cast %42 : vector<1x8x128xf32> to vector<8x128xf32>
    %44 = vector.shape_cast %41 : vector<8x128xf32> to vector<1x8x128xf32>
    tpu.vector_store %arg4[%c0_17, %c0_18, %c0_19], %44 {strides = array<i32>} : memref<1x40x128xf32, #tpu.memory_space<vmem>>, vector<1x8x128xf32>,
    %c0_20 = arith.constant 0 : index
    %c8 = arith.constant 8 : index
    %c0_21 = arith.constant 0 : index
    %45 = vector.load %arg4[%c0_20, %c8, %c0_21] : memref<1x40x128xf32, #tpu.memory_space<vmem>>, vector<1x8x128xf32>
    %46 = vector.shape_cast %45 : vector<1x8x128xf32> to vector<8x128xf32>
    %47 = vector.shape_cast %28 : vector<8x128xf32> to vector<1x8x128xf32>
    %cst_22 = arith.constant dense<0.000000e+00> : vector<8x128xf32>
    %48 = vector.multi_reduction <add>, %47, %cst_22 [0] : vector<1x8x128xf32> to vector<8x128xf32>
    %49 = arith.addf %46, %48 : vector<8x128xf32>
    %c0_23 = arith.constant 0 : index
    %c8_24 = arith.constant 8 : index
    %c0_25 = arith.constant 0 : index
    %50 = vector.load %arg4[%c0_23, %c8_24, %c0_25] : memref<1x40x128xf32, #tpu.memory_space<vmem>>, vector<1x8x128xf32>
    %51 = vector.shape_cast %50 : vector<1x8x128xf32> to vector<8x128xf32>
    %52 = vector.shape_cast %49 : vector<8x128xf32> to vector<1x8x128xf32>
    tpu.vector_store %arg4[%c0_23, %c8_24, %c0_25], %52 {strides = array<i32>} : memref<1x40x128xf32, #tpu.memory_space<vmem>>, vector<1x8x128xf32>,
    %c0_26 = arith.constant 0 : index
    %c16 = arith.constant 16 : index
    %c0_27 = arith.constant 0 : index
    %53 = vector.load %arg4[%c0_26, %c16, %c0_27] : memref<1x40x128xf32, #tpu.memory_space<vmem>>, vector<1x8x128xf32>
    %54 = vector.shape_cast %53 : vector<1x8x128xf32> to vector<8x128xf32>
    %55 = arith.mulf %24, %31 : vector<8x128xf32>
    %56 = vector.shape_cast %55 : vector<8x128xf32> to vector<1x8x128xf32>
    %cst_28 = arith.constant dense<0.000000e+00> : vector<8x128xf32>
    %57 = vector.multi_reduction <add>, %56, %cst_28 [0] : vector<1x8x128xf32> to vector<8x128xf32>
    %58 = arith.addf %54, %57 : vector<8x128xf32>
    %c0_29 = arith.constant 0 : index
    %c16_30 = arith.constant 16 : index
    %c0_31 = arith.constant 0 : index
    %59 = vector.load %arg4[%c0_29, %c16_30, %c0_31] : memref<1x40x128xf32, #tpu.memory_space<vmem>>, vector<1x8x128xf32>
    %60 = vector.shape_cast %59 : vector<1x8x128xf32> to vector<8x128xf32>
    %61 = vector.shape_cast %58 : vector<8x128xf32> to vector<1x8x128xf32>
    tpu.vector_store %arg4[%c0_29, %c16_30, %c0_31], %61 {strides = array<i32>} : memref<1x40x128xf32, #tpu.memory_space<vmem>>, vector<1x8x128xf32>,
    %c0_32 = arith.constant 0 : index
    %c24 = arith.constant 24 : index
    %c0_33 = arith.constant 0 : index
    %62 = vector.load %arg4[%c0_32, %c24, %c0_33] : memref<1x40x128xf32, #tpu.memory_space<vmem>>, vector<1x8x128xf32>
    %63 = vector.shape_cast %62 : vector<1x8x128xf32> to vector<8x128xf32>
    %64 = arith.mulf %24, %36 : vector<8x128xf32>
    %65 = vector.shape_cast %64 : vector<8x128xf32> to vector<1x8x128xf32>
    %cst_34 = arith.constant dense<0.000000e+00> : vector<8x128xf32>
    %66 = vector.multi_reduction <add>, %65, %cst_34 [0] : vector<1x8x128xf32> to vector<8x128xf32>
    %67 = arith.addf %63, %66 : vector<8x128xf32>
    %c0_35 = arith.constant 0 : index
    %c24_36 = arith.constant 24 : index
    %c0_37 = arith.constant 0 : index
    %68 = vector.load %arg4[%c0_35, %c24_36, %c0_37] : memref<1x40x128xf32, #tpu.memory_space<vmem>>, vector<1x8x128xf32>
    %69 = vector.shape_cast %68 : vector<1x8x128xf32> to vector<8x128xf32>
    %70 = vector.shape_cast %67 : vector<8x128xf32> to vector<1x8x128xf32>
    tpu.vector_store %arg4[%c0_35, %c24_36, %c0_37], %70 {strides = array<i32>} : memref<1x40x128xf32, #tpu.memory_space<vmem>>, vector<1x8x128xf32>,
    %c0_38 = arith.constant 0 : index
    %c32 = arith.constant 32 : index
    %c0_39 = arith.constant 0 : index
    %71 = vector.load %arg4[%c0_38, %c32, %c0_39] : memref<1x40x128xf32, #tpu.memory_space<vmem>>, vector<1x8x128xf32>
    %72 = vector.shape_cast %71 : vector<1x8x128xf32> to vector<8x128xf32>
    %73 = arith.mulf %28, %36 : vector<8x128xf32>
    %74 = vector.shape_cast %73 : vector<8x128xf32> to vector<1x8x128xf32>
    %cst_40 = arith.constant dense<0.000000e+00> : vector<8x128xf32>
    %75 = vector.multi_reduction <add>, %74, %cst_40 [0] : vector<1x8x128xf32> to vector<8x128xf32>
    %76 = arith.addf %72, %75 : vector<8x128xf32>
    %c0_41 = arith.constant 0 : index
    %c32_42 = arith.constant 32 : index
    %c0_43 = arith.constant 0 : index
    %77 = vector.load %arg4[%c0_41, %c32_42, %c0_43] : memref<1x40x128xf32, #tpu.memory_space<vmem>>, vector<1x8x128xf32>
    %78 = vector.shape_cast %77 : vector<1x8x128xf32> to vector<8x128xf32>
    %79 = vector.shape_cast %76 : vector<8x128xf32> to vector<1x8x128xf32>
    tpu.vector_store %arg4[%c0_41, %c32_42, %c0_43], %79 {strides = array<i32>} : memref<1x40x128xf32, #tpu.memory_space<vmem>>, vector<1x8x128xf32>,
    return
  }
  func.func @transform_0(%arg0: i32, %arg1: i32) -> (i32, i32) {
    %c1_i32 = arith.constant 1 : i32
    %0 = arith.muli %arg0, %c1_i32 : i32
    %1 = arith.addi %0, %arg1 : i32
    %c0_i32 = arith.constant 0 : i32
    %2 = arith.minsi %1, %c0_i32 : i32
    %c0_i32_0 = arith.constant 0 : i32
    %c0_i32_1 = arith.constant 0 : i32
    return %2, %c0_i32_0 : i32, i32
  }
  func.func @transform_1(%arg0: i32, %arg1: i32) -> (i32, i32) {
    %c1_i32 = arith.constant 1 : i32
    %0 = arith.muli %arg0, %c1_i32 : i32
    %1 = arith.addi %0, %arg1 : i32
    %c0_i32 = arith.constant 0 : i32
    %2 = arith.minsi %1, %c0_i32 : i32
    %c0_i32_0 = arith.constant 0 : i32
    %c0_i32_1 = arith.constant 0 : i32
    return %2, %c0_i32_0 : i32, i32
  }
  func.func @transform_2(%arg0: i32, %arg1: i32) -> (i32, i32, i32) {
    %c0_i32 = arith.constant 0 : i32
    %c0_i32_0 = arith.constant 0 : i32
    %c0_i32_1 = arith.constant 0 : i32
    return %arg0, %c0_i32, %c0_i32_0 : i32, i32, i32
  }
}

</mosaic_0001>

<llo_original>
// kernel: tpu_custom_call.1
$region0: #{tpu_custom_call.1}
  #allocation0 [shape = 'u32[]', space=smem, size = 0x4, offset = 0x4, fixed_abs, tag = 'smem constant byte address 0x4 - core index']
  #allocation1 [shape = 'u32[144,128]{1,0:T(1,128)}', space=vmem, size = 0x12000, scoped, tag = 'internal scratch']
  %s0 = inlined_call_operand.hbm [shape: f32[8,128], index: 0, kind: input, shape index: {}]
  %s1 = inlined_call_operand.hbm [shape: f32[8,128], index: 1, kind: input, shape index: {}]
  %s2 = inlined_call_operand.hbm [shape: f32[1,40,128], index: 2, kind: output, shape index: {}]
  %s3 = sld [smem:[#allocation0]]
  $region30: #{tpu_custom_call.1} parent=0
    _
  %s5 = ssub.s32 1, %s3
  %s6 = scalar_select 0, %s5, %s3
  $region1: #{tpu_custom_call.1} parent=0
    #allocation2 [shape = 'u8[4096]{0}', space=vmem, size = 0x1000, scoped, tag = 'input window, operand 0, single buffered']
    #allocation3 [shape = 's32[1]{0}', space=sflag, size = 0x4, scoped, tag = 'scoped memory for tpu_custom_call.1']
    #allocation4 [shape = 's32[1]{0}', space=sflag, size = 0x4, scoped, tag = 'scoped memory for tpu_custom_call.1']
    #allocation5 [shape = 'u8[4096]{0}', space=vmem, size = 0x1000, scoped, tag = 'input window, operand 1, single buffered']
    #allocation6 [shape = 's32[1]{0}', space=sflag, size = 0x4, scoped, tag = 'scoped memory for tpu_custom_call.1']
    #allocation7 [shape = 'u8[20480]{0}', space=vmem, size = 0x5000, scoped, tag = 'output window, operand 0, single buffered']
    %7 = vsyncpa [#allocation3], 0
    %8 = vsyncpa [#allocation6], 0
    %9 = vsyncpa [#allocation4], 0
    // Predicated region
    $region2: #{tpu_custom_call.1} parent=1 // pred_check
      _
    $region3: #{tpu_custom_call.1} parent=1 // pred_check_branch
      %11 = sbr.rel (0) target = $region5
    $region4: #{tpu_custom_call.1} parent=1 // pred_region
      %s12 = sadd.s32 0, 0
      %p13 = scmp.lt.s32.totalorder %s12, 0
      %s14 = scalar_select %p13, %s12, 0
      %s16 = ssub.s32 128, 128
      %17 = vsyncadd [#allocation3], %s16
      %s18 = smul.addr %s14, 128
      %s19 = scalar_lea.hbm %s0, %s18
      %s21 = sshll.u32 [#allocation2], 4
      %s22 = int_to_ptr.vmem [resolvable:$true] %s21
      %24 = dma.hbm_to_vmem [thread:$0]  %s19, 128, %s22, [#allocation3]
    $region5: #{tpu_custom_call.1} parent=1 // pred_fallthru
      _
    // Predicated region
    $region6: #{tpu_custom_call.1} parent=1 // pred_check
      _
    $region7: #{tpu_custom_call.1} parent=1 // pred_check_branch
      %26 = sbr.rel (0) target = $region9
    $region8: #{tpu_custom_call.1} parent=1 // pred_region
      %s27 = sadd.s32 0, 0
      %p28 = scmp.lt.s32.totalorder %s27, 0
      %s29 = scalar_select %p28, %s27, 0
      %s31 = ssub.s32 128, 128
      %32 = vsyncadd [#allocation6], %s31
      %s33 = smul.addr %s29, 128
      %s34 = scalar_lea.hbm %s1, %s33
      %s36 = sshll.u32 [#allocation5], 4
      %s37 = int_to_ptr.vmem [resolvable:$true] %s36
      %39 = dma.hbm_to_vmem [thread:$0]  %s34, 128, %s37, [#allocation6]
    $region9: #{tpu_custom_call.1} parent=1 // pred_fallthru
      _
    // Predicated region
    $region10: #{tpu_custom_call.1} parent=1 // pred_check
      _
    $region11: #{tpu_custom_call.1} parent=1 // pred_check_branch
      %41 = sbr.rel (0) target = $region13
    $region12: #{tpu_custom_call.1} parent=1 // pred_region
      %42 = dma.done [#allocation3], 128
    $region13: #{tpu_custom_call.1} parent=1 // pred_fallthru
      _
    // Predicated region
    $region14: #{tpu_custom_call.1} parent=1 // pred_check
      _
    $region15: #{tpu_custom_call.1} parent=1 // pred_check_branch
      %44 = sbr.rel (0) target = $region17
    $region16: #{tpu_custom_call.1} parent=1 // pred_region
      %45 = dma.done [#allocation6], 128
    $region17: #{tpu_custom_call.1} parent=1 // pred_fallthru
      _
    %s46 = sadd.s32 0, 0
    %p47 = scmp.lt.s32.totalorder %s46, 0
    %s48 = scalar_select %p47, %s46, 0
    %s49 = sadd.s32 0, 0
    %p50 = scmp.lt.s32.totalorder %s49, 0
    %s51 = scalar_select %p50, %s49, 0
    %p52 = scmp.eq.s32.totalorder 0, 0
    // Predicated region
    $region18: #{tpu_custom_call.1} parent=1 // pred_check
      %p53 = pneg %p52
    $region19: #{tpu_custom_call.1} parent=1 // pred_check_branch
      %55 = sbr.rel (%p53) target = $region21
    $region20: #{tpu_custom_call.1} parent=1 // pred_region
      %56 = vst [vmem:[#allocation7] sm:$0xff] 0.0
      %57 = vst [vmem:[#allocation7 + $0x8] sm:$0xff] 0.0
      %58 = vst [vmem:[#allocation7 + $0x10] sm:$0xff] 0.0
      %59 = vst [vmem:[#allocation7 + $0x18] sm:$0xff] 0.0
      %60 = vst [vmem:[#allocation7 + $0x20] sm:$0xff] 0.0
    $region21: #{tpu_custom_call.1} parent=1 // pred_fallthru
      _
    %s61 = sadd.s32 0, 0
    %s62 = smul.u32 %s61, 8
    %v63 = vld [vmem:[#allocation2] sm:$0xff]
    %v64 = vld [vmem:[#allocation5] sm:$0xff]
    %v65 = vlaneseq
    %v66 = vshrl.u32 %v65, 7
    %v67 = vstv %s62
    %v68 = vadd.s32 %v66, %v67
    %vm69 = vcmp.lt.s32.totalorder %v68, 8
    %v70 = vsel %vm69, %v63, 0.5
    %v71 = vmax.f32 %v70, 1e-07
    %v72 = vmin.f32 %v71, 0.9999999
    %v73 = vsel %vm69, %v64, 0.0
    %vm74 = vcmp.eq.f32.partialorder %v73, 1.0
    %v75 = vsel %vm74, 1, 0
    %v76 = vcvt.s32.f32 %v75
    %vm77 = vcmp.eq.f32.partialorder %v73, -1.0
    %v78 = vsel %vm77, 1, 0
    %v79 = vcvt.s32.f32 %v78
    %v80 = vlog2.pop %v72
    %v81 = vmul.f32 %v80, 0.6931472
    %v82 = vsub.f32 0.0, %v81
    %v83 = vsub.f32 1.0, %v72
    %v84 = vlog2.pop %v83
    %v85 = vmul.f32 %v84, 0.6931472
    %v86 = vsub.f32 0.0, %v85
    %v87 = vld [vmem:[#allocation7] sm:$0xff]
    %v88 = vadd.f32 %v76, 0.0
    %v89 = vadd.f32 %v87, %v88
    %90 = vst [vmem:[#allocation7] sm:$0xff] %v89
    %v91 = vld [vmem:[#allocation7 + $0x8] sm:$0xff]
    %v92 = vadd.f32 %v79, 0.0
    %v93 = vadd.f32 %v91, %v92
    %94 = vst [vmem:[#allocation7 + $0x8] sm:$0xff] %v93
    %v95 = vld [vmem:[#allocation7 + $0x10] sm:$0xff]
    %v96 = vmul.f32 %v76, %v82
    %v97 = vadd.f32 %v96, 0.0
    %v98 = vadd.f32 %v95, %v97
    %99 = vst [vmem:[#allocation7 + $0x10] sm:$0xff] %v98
    %v100 = vld [vmem:[#allocation7 + $0x18] sm:$0xff]
    %v101 = vmul.f32 %v76, %v86
    %v102 = vadd.f32 %v101, 0.0
    %v103 = vadd.f32 %v100, %v102
    %104 = vst [vmem:[#allocation7 + $0x18] sm:$0xff] %v103
    %v105 = vld [vmem:[#allocation7 + $0x20] sm:$0xff]
    %v106 = vmul.f32 %v79, %v86
    %v107 = vadd.f32 %v106, 0.0
    %v108 = vadd.f32 %v105, %v107
    %109 = vst [vmem:[#allocation7 + $0x20] sm:$0xff] %v108
    // Predicated region
    $region22: #{tpu_custom_call.1} parent=1 // pred_check
      _
    $region23: #{tpu_custom_call.1} parent=1 // pred_check_branch
      %111 = sbr.rel (0) target = $region25
    $region24: #{tpu_custom_call.1} parent=1 // pred_region
      %s113 = ssub.s32 640, 640
      %114 = vsyncadd [#allocation4], %s113
      %s115 = sshll.u32 [#allocation7], 4
      %s116 = int_to_ptr.vmem [resolvable:$true] %s115
      %121 = dma.vmem_to_hbm [thread:$0]  %s116, 640, %s2, [#allocation4], 128, 128, 8
    $region25: #{tpu_custom_call.1} parent=1 // pred_fallthru
      _
    // Predicated region
    $region26: #{tpu_custom_call.1} parent=1 // pred_check
      _
    $region27: #{tpu_custom_call.1} parent=1 // pred_check_branch
      %123 = sbr.rel (0) target = $region29
    $region28: #{tpu_custom_call.1} parent=1 // pred_region
      %124 = dma.done [#allocation4], 640
    $region29: #{tpu_custom_call.1} parent=1 // pred_fallthru
      _
    %125 = vsyncpa [#allocation3], 1
    %126 = vsyncpa [#allocation6], 1
    %127 = vsyncpa [#allocation4], 1

</llo_original>
